<compile_context>
chip_gen: v6e
topology: v6e:2x2x1
jax: 0.10.0
libtpu: 0.0.40
codegen_flags: <defaults>
</compile_context>

<pallas_src>
import jax
import jax.numpy as jnp
from jax.experimental import pallas as pl
from jax.experimental.pallas import tpu as pltpu


_LANES = 128
_SUBLANES = 8
# Target ~2 MiB per tile: in + out, double-buffered ~= 4x tile bytes = 8 MiB,
# comfortably under the 16 MiB (v5e) / 32 MiB (v6e/v7x) default scoped VMEM.
_TARGET_TILE_BYTES = 2 * 1024 * 1024


def _clamp_kernel(x_ref, o_ref):
    # Pure elementwise clamp to [0, 1] on one (TH, W2) row tile in VMEM.
    o_ref[...] = jnp.minimum(jnp.maximum(x_ref[...], 0.0), 1.0)


def torch2png_forward(tens: jax.Array, *, tile_rows: int | None = None) -> jax.Array:
    """Reproduces tens.squeeze(0).squeeze(0).clamp_(0, 1).

    Args:
      tens: float array of shape (1, 1, H, W) (NCHW with singleton N, C).
      tile_rows: optional override for the row-tile height (auto-picked if None).

    Returns:
      Array of shape (H, W), values clamped to [0, 1], same dtype as input.
    """
    assert tens.ndim == 4 and tens.shape[0] == 1 and tens.shape[1] == 1, (
        "expects singleton N and C (shape (1, 1, H, W))"
    )
    _, _, H, W = tens.shape
    dtype = tens.dtype
    itemsize = jnp.dtype(dtype).itemsize

    # Lane-dense view: keep the last dim a multiple of 128 lanes when possible.
    # A contiguous row-major reshape is free (no HBM copy).
    if W % _LANES == 0:
        H2, W2 = H, W
    elif (H * W) % _LANES == 0:
        H2, W2 = (H * W) // _LANES, _LANES
    else:
        H2, W2 = H, W  # fallback: full-extent last dim (masked stores)

    x = jnp.reshape(tens, (1, 1, H2, W2))

    # Pick a row-tile height: ~_TARGET_TILE_BYTES per tile, multiple of 8
    # sublanes, or the full image if it already fits one comfortable tile.
    if tile_rows is not None:
        th = min(H2, max(_SUBLANES, (tile_rows // _SUBLANES) * _SUBLANES))
    else:
        rows = max(1, _TARGET_TILE_BYTES // (W2 * itemsize))
        th = H2 if rows >= H2 else max(_SUBLANES, (rows // _SUBLANES) * _SUBLANES)
    grid = (pl.cdiv(H2, th),)

    out = pl.pallas_call(
        _clamp_kernel,
        out_shape=jax.ShapeDtypeStruct((H2, W2), dtype),
        grid=grid,
        in_specs=[
            pl.BlockSpec(
                (pl.Squeezed(), pl.Squeezed(), th, W2),
                lambda i: (0, 0, i, 0),
            )
        ],
        out_specs=pl.BlockSpec((th, W2), lambda i: (i, 0)),
        compiler_params=pltpu.CompilerParams(
            dimension_semantics=("parallel",),
        ),
    )(x)

    # TODO(synk): imageio.imwrite (PNG file I/O) has no Pallas/TPU equivalent;
    # the clamped image is returned instead of being written to disk.
    return jnp.reshape(out, (H, W))


if __name__ == "__main__":
    key = jax.random.PRNGKey(0)
    k0, k1 = jax.random.split(key)

    # (a) Tiny image with non-lane-aligned width (W=16) -> exercises the
    #     free lane-dense reshape path.  Values in [-1, 2) so the clamp acts.
    H, W = 16, 16
    tens_small = jax.random.uniform(
        k0, (1, 1, H, W), dtype=jnp.float32, minval=-1.0, maxval=2.0
    )
    out_small = jax.block_until_ready(torch2png_forward(tens_small))
    ref_small = jnp.clip(tens_small[0, 0], 0.0, 1.0)
    assert out_small.shape == (H, W)
    assert out_small.dtype == jnp.float32
    assert bool(jnp.array_equal(out_small, ref_small))

    # (b) Small lane-aligned image with a forced small tile so the row-tiled
    #     multi-block (pipelined, parallel-axis) path is exercised: grid=(4,).
    H2, W2 = 64, 256
    tens_tiled = jax.random.uniform(
        k1, (1, 1, H2, W2), dtype=jnp.float32, minval=-1.0, maxval=2.0
    )
    out_tiled = jax.block_until_ready(torch2png_forward(tens_tiled, tile_rows=16))
    ref_tiled = jnp.clip(tens_tiled[0, 0], 0.0, 1.0)
    assert out_tiled.shape == (H2, W2)
    assert out_tiled.dtype == jnp.float32
    assert bool(jnp.array_equal(out_tiled, ref_tiled))

    print("KERNEL_OK")
</pallas_src>

<mosaic_0001>
module attributes {stable_mosaic.version = 11 : i64} {
  func.func @_clamp_kernel(%arg0: i32, %arg1: memref<1x1x2x128xf32, #tpu.memory_space<vmem>>, %arg2: memref<2x128xf32, #tpu.memory_space<vmem>>) attributes {dimension_semantics = [#tpu.dimension_semantics<parallel>], iteration_bounds = array<i64: 1>, scalar_prefetch = 0 : i64, scratch_operands = 0 : i64, tpu.core_type = #tpu.core_type<tc>, window_params = [{transform_indices = @transform_0, window_bounds = array<i64: 1, 1, 2, 128>}, {transform_indices = @transform_1, window_bounds = array<i64: 2, 128>}]} {
    %c0 = arith.constant 0 : index
    %c0_0 = arith.constant 0 : index
    %c0_1 = arith.constant 0 : index
    %c0_2 = arith.constant 0 : index
    %0 = vector.load %arg1[%c0, %c0_0, %c0_1, %c0_2] : memref<1x1x2x128xf32, #tpu.memory_space<vmem>>, vector<1x1x2x128xf32>
    %1 = vector.shape_cast %0 : vector<1x1x2x128xf32> to vector<2x128xf32>
    %cst = arith.constant 0.000000e+00 : f32
    %2 = vector.broadcast %cst : f32 to vector<2x128xf32>
    %3 = arith.maximumf %1, %2 : vector<2x128xf32>
    %cst_3 = arith.constant 1.000000e+00 : f32
    %4 = vector.broadcast %cst_3 : f32 to vector<2x128xf32>
    %5 = arith.minimumf %3, %4 : vector<2x128xf32>
    %c0_4 = arith.constant 0 : index
    %c0_5 = arith.constant 0 : index
    %6 = vector.load %arg2[%c0_4, %c0_5] : memref<2x128xf32, #tpu.memory_space<vmem>>, vector<2x128xf32>
    tpu.vector_store %arg2[%c0_4, %c0_5], %5 {strides = array<i32>} : memref<2x128xf32, #tpu.memory_space<vmem>>, vector<2x128xf32>,
    return
  }
  func.func @transform_0(%arg0: i32) -> (i32, i32, i32, i32) {
    %c0_i32 = arith.constant 0 : i32
    %c0_i32_0 = arith.constant 0 : i32
    %c0_i32_1 = arith.constant 0 : i32
    %c0_i32_2 = arith.constant 0 : i32
    return %c0_i32, %c0_i32_0, %arg0, %c0_i32_1 : i32, i32, i32, i32
  }
  func.func @transform_1(%arg0: i32) -> (i32, i32) {
    %c0_i32 = arith.constant 0 : i32
    %c0_i32_0 = arith.constant 0 : i32
    return %arg0, %c0_i32 : i32, i32
  }
}

</mosaic_0001>

<llo_original>
// kernel: tpu_custom_call.1
$region0: #{tpu_custom_call.1}
  #allocation0 [shape = 'u32[]', space=smem, size = 0x4, offset = 0x4, fixed_abs, tag = 'smem constant byte address 0x4 - core index']
  #allocation1 [shape = 'u32[144,128]{1,0:T(1,128)}', space=vmem, size = 0x12000, scoped, tag = 'internal scratch']
  %s0 = inlined_call_operand.hbm [shape: f32[1,1,2,128], index: 0, kind: input, shape index: {}]
  %s1 = inlined_call_operand.hbm [shape: f32[2,128], index: 1, kind: output, shape index: {}]
  %s2 = sld [smem:[#allocation0]]
  $region18: #{tpu_custom_call.1} parent=0
    _
  %s4 = ssub.s32 1, %s2
  %s5 = scalar_select 0, %s4, %s2
  $region1: #{tpu_custom_call.1} parent=0
    #allocation2 [shape = 'u8[1024]{0}', space=vmem, size = 0x400, scoped, tag = 'input window, operand 0, single buffered']
    #allocation3 [shape = 's32[1]{0}', space=sflag, size = 0x4, scoped, tag = 'scoped memory for tpu_custom_call.1']
    #allocation4 [shape = 's32[1]{0}', space=sflag, size = 0x4, scoped, tag = 'scoped memory for tpu_custom_call.1']
    #allocation5 [shape = 'u8[1024]{0}', space=vmem, size = 0x400, scoped, tag = 'output window, operand 0, single buffered']
    %6 = vsyncpa [#allocation3], 0
    %7 = vsyncpa [#allocation4], 0
    // Predicated region
    $region2: #{tpu_custom_call.1} parent=1 // pred_check
      _
    $region3: #{tpu_custom_call.1} parent=1 // pred_check_branch
      %9 = sbr.rel (0) target = $region5
    $region4: #{tpu_custom_call.1} parent=1 // pred_region
      %s11 = ssub.s32 32, 32
      %12 = vsyncadd [#allocation3], %s11
      %s14 = sshll.u32 [#allocation2], 4
      %s15 = int_to_ptr.vmem [resolvable:$true] %s14
      %17 = dma.hbm_to_vmem [thread:$0]  %s0, 32, %s15, [#allocation3]
    $region5: #{tpu_custom_call.1} parent=1 // pred_fallthru
      _
    // Predicated region
    $region6: #{tpu_custom_call.1} parent=1 // pred_check
      _
    $region7: #{tpu_custom_call.1} parent=1 // pred_check_branch
      %19 = sbr.rel (0) target = $region9
    $region8: #{tpu_custom_call.1} parent=1 // pred_region
      %20 = dma.done [#allocation3], 32
    $region9: #{tpu_custom_call.1} parent=1 // pred_fallthru
      _
    %v21 = vld [vmem:[#allocation2] sm:$0x3]
    %v22 = vmax.f32 %v21, 0.0
    %v23 = vmin.f32 %v22, 1.0
    %24 = vst [vmem:[#allocation5] sm:$0x3] %v23
    // Predicated region
    $region10: #{tpu_custom_call.1} parent=1 // pred_check
      _
    $region11: #{tpu_custom_call.1} parent=1 // pred_check_branch
      %26 = sbr.rel (0) target = $region13
    $region12: #{tpu_custom_call.1} parent=1 // pred_region
      %s28 = ssub.s32 32, 32
      %29 = vsyncadd [#allocation4], %s28
      %s31 = sshll.u32 [#allocation5], 4
      %s32 = int_to_ptr.vmem [resolvable:$true] %s31
      %34 = dma.vmem_to_hbm [thread:$0]  %s32, 32, %s1, [#allocation4]
    $region13: #{tpu_custom_call.1} parent=1 // pred_fallthru
      _
    // Predicated region
    $region14: #{tpu_custom_call.1} parent=1 // pred_check
      _
    $region15: #{tpu_custom_call.1} parent=1 // pred_check_branch
      %36 = sbr.rel (0) target = $region17
    $region16: #{tpu_custom_call.1} parent=1 // pred_region
      %37 = dma.done [#allocation4], 32
    $region17: #{tpu_custom_call.1} parent=1 // pred_fallthru
      _
    %38 = vsyncpa [#allocation3], 1
    %39 = vsyncpa [#allocation4], 1

</llo_original>
